<compile_context>
chip_gen: v5e
topology: v5e:2x2
jax: 0.10.0
libtpu: 0.0.40
codegen_flags: <defaults>
</compile_context>

<pallas_src>
import functools

import jax
import jax.numpy as jnp
from jax.experimental import pallas as pl
from jax.experimental.pallas import tpu as pltpu


def _attention_gate_kernel(g_ref, x_ref, wg_ref, bg_ref, wx_ref, bx_ref,
                           wpsi_ref, bpsi_ref, out_ref):
    # Block shapes (batch dim squeezed out via BlockSpec):
    #   g_ref:   (F_g, tS)      x_ref:  (F_l, tS)
    #   wg_ref:  (F_int, F_g)   wx_ref: (F_int, F_l)
    #   bg_ref / bx_ref / wpsi_ref: (F_int, 1)     bpsi_ref: (1, 1)
    #   out_ref: (F_int, tS)    -- lane-dense output block
    g = g_ref[...]
    x = x_ref[...]

    # 1x1 convs as channel matmuls, f32 accumulation on the MXU.
    g_int = jnp.dot(wg_ref[...], g, preferred_element_type=jnp.float32) + bg_ref[...]
    x_int = jnp.dot(wx_ref[...], x, preferred_element_type=jnp.float32) + bx_ref[...]

    a = jnp.maximum(g_int + x_int, 0.0)                         # ReLU (VPU)

    # psi: F_int -> 1 conv as VPU multiply + sublane reduction (XLU slot),
    # instead of a 1-column MXU matmul.
    psi = jnp.sum(a * wpsi_ref[...], axis=0, keepdims=True) + bpsi_ref[...]
    psi = jax.nn.sigmoid(psi)                                    # (1, tS)

    out_ref[...] = (x_int * psi).astype(out_ref.dtype)           # broadcast over F_int


def _pick_tile(S, F_g, F_l, F_int, itemsize):
    """Largest lane-tile (multiple of 128) whose double-buffered I/O tiles stay
    well inside every chip generation's scoped VMEM (v5e 16 MiB default is the
    binding constraint; v7x physical VMEM is 64 MiB)."""
    per_lane = 2 * (F_g + F_l + F_int) * max(itemsize, 1)   # 2x: double-buffered
    budget = 12 * 1024 * 1024
    ts = (budget // per_lane) // 128 * 128
    ts = max(128, min(ts, 4096))
    s_rounded = ((S + 127) // 128) * 128
    return min(ts, s_rounded)


@functools.partial(jax.jit, static_argnames=("ts",))
def _attention_gate_pallas(g3, x3, wg, bg, wx, bx, wpsi, bpsi, *, ts):
    """g3: (N, F_g, S), x3: (N, F_l, S)  ->  (N, F_int, S)."""
    N, F_g, S = g3.shape
    _, F_l, _ = x3.shape
    F_int = wg.shape[0]

    S_pad = ((S + ts - 1) // ts) * ts
    if S_pad != S:
        g3 = jnp.pad(g3, ((0, 0), (0, 0), (0, S_pad - S)))
        x3 = jnp.pad(x3, ((0, 0), (0, 0), (0, S_pad - S)))

    out = pl.pallas_call(
        _attention_gate_kernel,
        out_shape=jax.ShapeDtypeStruct((N, F_int, S_pad), x3.dtype),
        grid_spec=pltpu.PrefetchScalarGridSpec(
            num_scalar_prefetch=0,
            grid=(N, S_pad // ts),
            in_specs=[
                pl.BlockSpec((None, F_g, ts), lambda n, s: (n, 0, s)),   # g tile
                pl.BlockSpec((None, F_l, ts), lambda n, s: (n, 0, s)),   # x tile
                pl.BlockSpec((F_int, F_g), lambda n, s: (0, 0)),         # W_g^T
                pl.BlockSpec((F_int, 1), lambda n, s: (0, 0)),           # b_g
                pl.BlockSpec((F_int, F_l), lambda n, s: (0, 0)),         # W_x^T
                pl.BlockSpec((F_int, 1), lambda n, s: (0, 0)),           # b_x
                pl.BlockSpec((F_int, 1), lambda n, s: (0, 0)),           # W_psi
                pl.BlockSpec((1, 1), lambda n, s: (0, 0)),               # b_psi
            ],
            out_specs=pl.BlockSpec((None, F_int, ts), lambda n, s: (n, 0, s)),
        ),
        compiler_params=pltpu.CompilerParams(
            dimension_semantics=("parallel", "parallel"),
            vmem_limit_bytes=32 * 1024 * 1024,
        ),
    )(g3, x3, wg, bg, wx, bx, wpsi, bpsi)

    return out[:, :, :S]


def attention_gate(g, x, params, ts=None):
    """g: (N, F_g, *spatial), x: (N, F_l, *spatial)  ->  (N, F_int, *spatial)."""
    wg, bg, wx, bx, wpsi, bpsi = params
    N = x.shape[0]
    spatial = x.shape[2:]

    if g.shape[2:] != spatial:
        # PyTorch interpolates AFTER W_g; since W_g is a 1x1 affine map and
        # trilinear interpolation weights sum to 1, resizing g first is exact.
        # TODO(synk): trilinear upsample is done with jax.image.resize in the
        # JAX glue, not inside the Pallas kernel.
        g = jax.image.resize(g, (g.shape[0], g.shape[1]) + spatial, method="trilinear")

    F_g = g.shape[1]
    F_l = x.shape[1]
    F_int = wg.shape[0]

    S = 1
    for d in spatial:
        S *= d

    # Channels-first flatten of spatial: a pure (free) reshape, no transpose.
    g3 = g.reshape(N, F_g, S)
    x3 = x.reshape(N, F_l, S)

    if ts is None:
        ts = _pick_tile(S, F_g, F_l, F_int, jnp.dtype(x3.dtype).itemsize)

    out3 = _attention_gate_pallas(
        g3, x3,
        wg, bg.reshape(F_int, 1),
        wx, bx.reshape(F_int, 1),
        wpsi.reshape(F_int, 1), bpsi.reshape(1, 1),
        ts=ts,
    )
    return out3.reshape((N, F_int) + spatial)


def init_params(key, F_g, F_l, F_int, dtype=jnp.float32):
    """Deterministic synthetic parameters (PyTorch Conv3d 1x1x1: weight (out, in))."""
    ks = jax.random.split(key, 6)
    wg = jax.random.normal(ks[0], (F_int, F_g), dtype) * 0.2
    bg = jax.random.normal(ks[1], (F_int,), dtype) * 0.05
    wx = jax.random.normal(ks[2], (F_int, F_l), dtype) * 0.2
    bx = jax.random.normal(ks[3], (F_int,), dtype) * 0.05
    wpsi = jax.random.normal(ks[4], (1, F_int), dtype) * 0.2
    bpsi = jax.random.normal(ks[5], (1,), dtype) * 0.05
    return (wg, bg, wx, bx, wpsi, bpsi)


def _reference(g, x, params):
    """Pure-JAX reference of the PyTorch forward (NCDHW, PyTorch op order)."""
    wg, bg, wx, bx, wpsi, bpsi = params
    bshape = (1, -1) + (1,) * (x.ndim - 2)
    gi = jnp.einsum("nc...,kc->nk...", g, wg) + bg.reshape(bshape)
    xi = jnp.einsum("nc...,kc->nk...", x, wx) + bx.reshape(bshape)
    if gi.shape[2:] != xi.shape[2:]:
        gi = jax.image.resize(gi, gi.shape[:2] + xi.shape[2:], method="trilinear")
    a = jnp.maximum(gi + xi, 0.0)
    psi = jnp.einsum("nc...,kc->nk...", a, wpsi) + bpsi.reshape((1, 1) + (1,) * (x.ndim - 2))
    psi = jax.nn.sigmoid(psi)
    return xi * psi


if __name__ == "__main__":
    key = jax.random.PRNGKey(0)
    k_g, k_x, k_p, k_g2, k_g3, k_x3 = jax.random.split(key, 6)

    # dims=3 (default): NCDHW inputs.
    N, F_g, F_l, F_int = 2, 4, 4, 8
    D = H = W = 8
    g = jax.random.normal(k_g, (N, F_g, D, H, W), jnp.float32)
    x = jax.random.normal(k_x, (N, F_l, D, H, W), jnp.float32)
    params = init_params(k_p, F_g, F_l, F_int)

    out = jax.block_until_ready(attention_gate(g, x, params))
    ref = _reference(g, x, params)
    assert out.shape == (N, F_int, D, H, W), out.shape
    assert jnp.allclose(out, ref, atol=1e-5, rtol=1e-5), "mismatch vs reference"

    # Spatial-mismatch path: g at half resolution (trilinear upsample in glue).
    g_small = jax.random.normal(k_g2, (N, F_g, D // 2, H // 2, W // 2), jnp.float32)
    out2 = jax.block_until_ready(attention_gate(g_small, x, params))
    ref2 = _reference(g_small, x, params)
    assert out2.shape == (N, F_int, D, H, W), out2.shape
    assert jnp.allclose(out2, ref2, atol=1e-4, rtol=1e-4), "mismatch (upsample path)"

    # Non-128-divisible spatial (exercises the pad/slice tail path).
    g_odd = jax.random.normal(k_g3, (N, F_g, 5, 5, 5), jnp.float32)
    x_odd = jax.random.normal(k_x3, (N, F_l, 5, 5, 5), jnp.float32)
    out3 = jax.block_until_ready(attention_gate(g_odd, x_odd, params))
    ref3 = _reference(g_odd, x_odd, params)
    assert out3.shape == (N, F_int, 5, 5, 5), out3.shape
    assert jnp.allclose(out3, ref3, atol=1e-5, rtol=1e-5), "mismatch (ragged spatial)"

    print("KERNEL_OK")
</pallas_src>

<mosaic_0001>
module attributes {stable_mosaic.version = 11 : i64} {
  func.func @_attention_gate_kernel(%arg0: i32, %arg1: i32, %arg2: memref<1x4x512xf32, #tpu.memory_space<vmem>>, %arg3: memref<1x4x512xf32, #tpu.memory_space<vmem>>, %arg4: memref<8x4xf32, #tpu.memory_space<vmem>>, %arg5: memref<8x1xf32, #tpu.memory_space<vmem>>, %arg6: memref<8x4xf32, #tpu.memory_space<vmem>>, %arg7: memref<8x1xf32, #tpu.memory_space<vmem>>, %arg8: memref<8x1xf32, #tpu.memory_space<vmem>>, %arg9: memref<1x1xf32, #tpu.memory_space<vmem>>, %arg10: memref<1x8x512xf32, #tpu.memory_space<vmem>>) attributes {dimension_semantics = [#tpu.dimension_semantics<parallel>, #tpu.dimension_semantics<parallel>], iteration_bounds = array<i64: 2, 1>, scalar_prefetch = 0 : i64, scratch_operands = 0 : i64, tpu.core_type = #tpu.core_type<tc>, window_params = [{transform_indices = @transform_0, window_bounds = array<i64: 1, 4, 512>}, {transform_indices = @transform_1, window_bounds = array<i64: 1, 4, 512>}, {pipeline_mode = #tpu.pipeline_mode<synchronous>, transform_indices = @transform_2, window_bounds = array<i64: 8, 4>}, {pipeline_mode = #tpu.pipeline_mode<synchronous>, transform_indices = @transform_3, window_bounds = array<i64: 8, 1>}, {pipeline_mode = #tpu.pipeline_mode<synchronous>, transform_indices = @transform_4, window_bounds = array<i64: 8, 4>}, {pipeline_mode = #tpu.pipeline_mode<synchronous>, transform_indices = @transform_5, window_bounds = array<i64: 8, 1>}, {pipeline_mode = #tpu.pipeline_mode<synchronous>, transform_indices = @transform_6, window_bounds = array<i64: 8, 1>}, {pipeline_mode = #tpu.pipeline_mode<synchronous>, transform_indices = @transform_7, window_bounds = array<i64: 1, 1>}, {transform_indices = @transform_8, window_bounds = array<i64: 1, 8, 512>}]} {
    %c0 = arith.constant 0 : index
    %c0_0 = arith.constant 0 : index
    %c0_1 = arith.constant 0 : index
    %0 = vector.load %arg2[%c0, %c0_0, %c0_1] : memref<1x4x512xf32, #tpu.memory_space<vmem>>, vector<1x4x512xf32>
    %1 = vector.shape_cast %0 : vector<1x4x512xf32> to vector<4x512xf32>
    %c0_2 = arith.constant 0 : index
    %c0_3 = arith.constant 0 : index
    %c0_4 = arith.constant 0 : index
    %2 = vector.load %arg3[%c0_2, %c0_3, %c0_4] : memref<1x4x512xf32, #tpu.memory_space<vmem>>, vector<1x4x512xf32>
    %3 = vector.shape_cast %2 : vector<1x4x512xf32> to vector<4x512xf32>
    %c0_5 = arith.constant 0 : index
    %c0_6 = arith.constant 0 : index
    %4 = vector.load %arg4[%c0_5, %c0_6] : memref<8x4xf32, #tpu.memory_space<vmem>>, vector<8x4xf32>
    %cst = arith.constant dense<0.000000e+00> : vector<8x512xf32>
    %5 = tpu.matmul %4, %1, %cst {dimension_numbers = #tpu.dot_dimension_numbers<[1], [0], [0], [1], [0, 0, 1, 1], [], []>} : vector<8x4xf32>, vector<4x512xf32>, vector<8x512xf32> -> vector<8x512xf32>
    %c0_7 = arith.constant 0 : index
    %c0_8 = arith.constant 0 : index
    %6 = vector.load %arg5[%c0_7, %c0_8] : memref<8x1xf32, #tpu.memory_space<vmem>>, vector<8x1xf32>
    %7 = vector.broadcast %6 : vector<8x1xf32> to vector<8x512xf32>
    %8 = arith.addf %5, %7 : vector<8x512xf32>
    %c0_9 = arith.constant 0 : index
    %c0_10 = arith.constant 0 : index
    %9 = vector.load %arg6[%c0_9, %c0_10] : memref<8x4xf32, #tpu.memory_space<vmem>>, vector<8x4xf32>
    %cst_11 = arith.constant dense<0.000000e+00> : vector<8x512xf32>
    %10 = tpu.matmul %9, %3, %cst_11 {dimension_numbers = #tpu.dot_dimension_numbers<[1], [0], [0], [1], [0, 0, 1, 1], [], []>} : vector<8x4xf32>, vector<4x512xf32>, vector<8x512xf32> -> vector<8x512xf32>
    %c0_12 = arith.constant 0 : index
    %c0_13 = arith.constant 0 : index
    %11 = vector.load %arg7[%c0_12, %c0_13] : memref<8x1xf32, #tpu.memory_space<vmem>>, vector<8x1xf32>
    %12 = vector.broadcast %11 : vector<8x1xf32> to vector<8x512xf32>
    %13 = arith.addf %10, %12 : vector<8x512xf32>
    %14 = arith.addf %8, %13 : vector<8x512xf32>
    %cst_14 = arith.constant 0.000000e+00 : f32
    %15 = vector.broadcast %cst_14 : f32 to vector<8x512xf32>
    %16 = arith.maximumf %14, %15 : vector<8x512xf32>
    %c0_15 = arith.constant 0 : index
    %c0_16 = arith.constant 0 : index
    %17 = vector.load %arg8[%c0_15, %c0_16] : memref<8x1xf32, #tpu.memory_space<vmem>>, vector<8x1xf32>
    %18 = vector.broadcast %17 : vector<8x1xf32> to vector<8x512xf32>
    %19 = arith.mulf %16, %18 : vector<8x512xf32>
    %cst_17 = arith.constant dense<0.000000e+00> : vector<512xf32>
    %20 = vector.multi_reduction <add>, %19, %cst_17 [0] : vector<8x512xf32> to vector<512xf32>
    %21 = vector.shape_cast %20 : vector<512xf32> to vector<1x512xf32>
    %c0_18 = arith.constant 0 : index
    %c0_19 = arith.constant 0 : index
    %22 = vector.load %arg9[%c0_18, %c0_19] : memref<1x1xf32, #tpu.memory_space<vmem>>, vector<1x1xf32>
    %23 = vector.broadcast %22 : vector<1x1xf32> to vector<1x512xf32>
    %24 = arith.addf %21, %23 : vector<1x512xf32>
    %25 = arith.negf %24 : vector<1x512xf32>
    %26 = math.exp %25 : vector<1x512xf32>
    %cst_20 = arith.constant 1.000000e+00 : f32
    %27 = vector.broadcast %cst_20 : f32 to vector<1x512xf32>
    %28 = arith.addf %27, %26 : vector<1x512xf32>
    %29 = arith.divf %27, %28 : vector<1x512xf32>
    %30 = vector.broadcast %29 : vector<1x512xf32> to vector<8x512xf32>
    %31 = arith.mulf %13, %30 : vector<8x512xf32>
    %c0_21 = arith.constant 0 : index
    %c0_22 = arith.constant 0 : index
    %c0_23 = arith.constant 0 : index
    %32 = vector.load %arg10[%c0_21, %c0_22, %c0_23] : memref<1x8x512xf32, #tpu.memory_space<vmem>>, vector<1x8x512xf32>
    %33 = vector.shape_cast %32 : vector<1x8x512xf32> to vector<8x512xf32>
    %34 = vector.shape_cast %31 : vector<8x512xf32> to vector<1x8x512xf32>
    tpu.vector_store %arg10[%c0_21, %c0_22, %c0_23], %34 {strides = array<i32>} : memref<1x8x512xf32, #tpu.memory_space<vmem>>, vector<1x8x512xf32>,
    return
  }
  func.func @transform_0(%arg0: i32, %arg1: i32) -> (i32, i32, i32) {
    %c0_i32 = arith.constant 0 : i32
    %c0_i32_0 = arith.constant 0 : i32
    return %arg0, %c0_i32, %arg1 : i32, i32, i32
  }
  func.func @transform_1(%arg0: i32, %arg1: i32) -> (i32, i32, i32) {
    %c0_i32 = arith.constant 0 : i32
    %c0_i32_0 = arith.constant 0 : i32
    return %arg0, %c0_i32, %arg1 : i32, i32, i32
  }
  func.func @transform_2(%arg0: i32, %arg1: i32) -> (i32, i32) {
    %c0_i32 = arith.constant 0 : i32
    %c0_i32_0 = arith.constant 0 : i32
    %c0_i32_1 = arith.constant 0 : i32
    return %c0_i32, %c0_i32_0 : i32, i32
  }
  func.func @transform_3(%arg0: i32, %arg1: i32) -> (i32, i32) {
    %c0_i32 = arith.constant 0 : i32
    %c0_i32_0 = arith.constant 0 : i32
    %c0_i32_1 = arith.constant 0 : i32
    return %c0_i32, %c0_i32_0 : i32, i32
  }
  func.func @transform_4(%arg0: i32, %arg1: i32) -> (i32, i32) {
    %c0_i32 = arith.constant 0 : i32
    %c0_i32_0 = arith.constant 0 : i32
    %c0_i32_1 = arith.constant 0 : i32
    return %c0_i32, %c0_i32_0 : i32, i32
  }
  func.func @transform_5(%arg0: i32, %arg1: i32) -> (i32, i32) {
    %c0_i32 = arith.constant 0 : i32
    %c0_i32_0 = arith.constant 0 : i32
    %c0_i32_1 = arith.constant 0 : i32
    return %c0_i32, %c0_i32_0 : i32, i32
  }
  func.func @transform_6(%arg0: i32, %arg1: i32) -> (i32, i32) {
    %c0_i32 = arith.constant 0 : i32
    %c0_i32_0 = arith.constant 0 : i32
    %c0_i32_1 = arith.constant 0 : i32
    return %c0_i32, %c0_i32_0 : i32, i32
  }
  func.func @transform_7(%arg0: i32, %arg1: i32) -> (i32, i32) {
    %c0_i32 = arith.constant 0 : i32
    %c0_i32_0 = arith.constant 0 : i32
    %c0_i32_1 = arith.constant 0 : i32
    return %c0_i32, %c0_i32_0 : i32, i32
  }
  func.func @transform_8(%arg0: i32, %arg1: i32) -> (i32, i32, i32) {
    %c0_i32 = arith.constant 0 : i32
    %c0_i32_0 = arith.constant 0 : i32
    return %arg0, %c0_i32, %arg1 : i32, i32, i32
  }
}

</mosaic_0001>

<llo_original>
// kernel: _attention_gate_pallas.1
$region0: #{_attention_gate_pallas.1}
  #allocation0 [shape = 'u32[]', space=smem, size = 0x4, offset = 0x4, fixed_abs, tag = 'smem constant byte address 0x4 - core index']
  #allocation1 [shape = 'u32[72,128]{1,0:T(1,128)}', space=vmem, size = 0x9000, scoped, tag = 'internal scratch']
  #allocation2 [shape = 'f32[1,1]{1,0:T(1,128)S(1)}', space=vmem, size = 0x200, scoped, tag = 'scoped memory for _attention_gate_pallas.1']
  %s0 = inlined_call_operand.hbm [shape: f32[2,4,512], index: 0, kind: input, shape index: {}]
  %s1 = inlined_call_operand.hbm [shape: f32[2,4,512], index: 1, kind: input, shape index: {}]
  %s2 = inlined_call_operand.vmem [shape: f32[8,4], index: 2, kind: input, shape index: {}]
  %s3 = inlined_call_operand.vmem [shape: f32[8,1], index: 3, kind: input, shape index: {}]
  %s4 = inlined_call_operand.vmem [shape: f32[8,4], index: 4, kind: input, shape index: {}]
  %s5 = inlined_call_operand.vmem [shape: f32[8,1], index: 5, kind: input, shape index: {}]
  %s6 = inlined_call_operand.vmem [shape: f32[8,1], index: 6, kind: input, shape index: {}]
  %s7 = inlined_call_operand.<no memory space> [shape: f32[1,1], index: 7, kind: input, shape index: {}]
  %s8 = inlined_call_operand.hbm [shape: f32[2,8,512], index: 8, kind: output, shape index: {}]
  %s9 = sld [smem:[#allocation0]]
  $region73: #{_attention_gate_pallas.1} parent=0
    _
  %s11 = ssub.s32 1, %s9
  %s12 = scalar_select 0, %s11, %s9
  %v13 = vstv %s7
  %14 = vst [vmem:[#allocation2] sm:$0x1] %v13
  $region1: #{_attention_gate_pallas.1} parent=0
    #allocation3 [shape = 'u8[16384]{0}', space=vmem, size = 0x4000, scoped, tag = 'input window, operand 0']
    #allocation4 [shape = 's32[2]{0}', space=sflag, size = 0x8, scoped, tag = 'scoped memory for _attention_gate_pallas.1']
    #allocation5 [shape = 's32[2]{0}', space=sflag, size = 0x8, scoped, tag = 'scoped memory for _attention_gate_pallas.1']
    #allocation6 [shape = 'u8[16384]{0}', space=vmem, size = 0x4000, scoped, tag = 'input window, operand 1']
    #allocation7 [shape = 's32[2]{0}', space=sflag, size = 0x8, scoped, tag = 'scoped memory for _attention_gate_pallas.1']
    #allocation8 [shape = 'u8[32768]{0}', space=vmem, size = 0x8000, scoped, tag = 'output window, operand 0']
    %15 = vsyncpa [#allocation4], 0
    %s16 = scalar_lea.sflag [#allocation4], 1
    %17 = vsyncpa %s16, 0
    %18 = vsyncpa [#allocation7], 0
    %s19 = scalar_lea.sflag [#allocation7], 1
    %20 = vsyncpa %s19, 0
    %21 = vsyncpa [#allocation5], 0
    %s22 = scalar_lea.sflag [#allocation5], 1
    %23 = vsyncpa %s22, 0
    loop: start=0, step=1, limit=4
    $region2: #{_attention_gate_pallas.1} parent=1 // loop_pre_header
      _
    $region3: #{_attention_gate_pallas.1} parent=1 // loop_header
      %s25 = sphi 0, %s29
      %p26 = scmp.ge.s32.totalorder %s25, 4
      %s32 = sphi 0, %s44
      %s33 = sphi 0, %s40
      %s34 = sphi 0, %s32
      %s35 = sphi 0, %s33
      %s36 = sphi 0, %s34
      %s37 = sphi 0, %s35
      %s49 = sphi 0, %s51
      %s52 = sphi 0, %s49
      %s53 = sphi 0, %s52
      %s69 = sphi 0, %s53
      %s77 = sphi 0, %s79
      %s80 = sphi 0, %s77
      %s81 = sphi 0, %s80
      %s97 = sphi 0, %s81
      %s101 = sphi 0, %s101
      %s103 = sphi 0, %s101
      %s104 = sphi 0, %s103
      %s118 = sphi 0, %s104
      %s122 = sphi 0, %s122
      %s124 = sphi 0, %s122
      %s125 = sphi 0, %s124
      %s139 = sphi 0, %s125
      %s143 = sphi 0, %s143
      %s145 = sphi 0, %s143
      %s146 = sphi 0, %s145
      %s160 = sphi 0, %s146
      %s164 = sphi 0, %s164
      %s166 = sphi 0, %s164
      %s167 = sphi 0, %s166
      %s181 = sphi 0, %s167
      %s185 = sphi 0, %s185
      %s187 = sphi 0, %s185
      %s188 = sphi 0, %s187
      %s202 = sphi 0, %s188
      %s206 = sphi 0, %s206
      %s208 = sphi 0, %s206
      %s209 = sphi 0, %s208
      %s223 = sphi 0, %s209
      %s231 = sphi 0, %s233
      %s234 = sphi 0, %s231
      %s235 = sphi 0, %s234
      %s251 = sphi 0, %s235
    $region4: #{_attention_gate_pallas.1} parent=1 // loop_header_branch
      %28 = sbr.rel (%p26) target = $region8
    $region5: #{_attention_gate_pallas.1} parent=1 // loop_body
      %s30 = ssub.s32 %s25, 1
      %s31 = ssub.s32 %s25, 2
      %s38 = sadd.s32 1, %s33
      %p39 = scmp.ge.s32.totalorder %s38, 1
      %s40 = scalar_select %p39, 0, %s38
      %s41 = sadd.s32 1, %s32
      %s42 = scalar_select %p39, %s41, %s32
      %p43 = scmp.ge.s32.totalorder %s42, 2
      %s44 = scalar_select %p43, 0, %s42
      %s45 = ssub.s32 %s32, %s44
      %s46 = ssub.s32 %s33, %s40
      %s47 = sor.u32 %s45, %s46
      %p48 = scmp.eq.s32.totalorder %s47, 0
      %s50 = sadd.s32 %s49, 1
      %s51 = scalar_select %p48, %s49, %s50
      %p54 = pneg %p48
      %p55 = scmp.eq.s32.totalorder %s25, 1
      %p56 = por %p54, %p55
      %p57 = scmp.ne.s32.totalorder %s49, %s52
      %p58 = scmp.eq.s32.totalorder %s25, 0
      %p59 = por %p57, %p58
      %p60 = scmp.ne.s32.totalorder %s49, %s52
      %p61 = scmp.eq.s32.totalorder %s30, 1
      %p62 = por %p60, %p61
      %p63 = scmp.ne.s32.totalorder %s52, %s53
      %p64 = scmp.eq.s32.totalorder %s30, 0
      %p65 = por %p63, %p64
      %p66 = scmp.ne.s32.totalorder %s52, %s53
      %p67 = scmp.eq.s32.totalorder %s31, 1
      %p68 = por %p66, %p67
      %p70 = scmp.ne.s32.totalorder %s53, %s69
      %p71 = scmp.eq.s32.totalorder %s31, 0
      %p72 = por %p70, %p71
      %s73 = ssub.s32 %s32, %s44
      %s74 = ssub.s32 %s33, %s40
      %s75 = sor.u32 %s73, %s74
      %p76 = scmp.eq.s32.totalorder %s75, 0
      %s78 = sadd.s32 %s77, 1
      %s79 = scalar_select %p76, %s77, %s78
      %p82 = pneg %p76
      %p83 = scmp.eq.s32.totalorder %s25, 1
      %p84 = por %p82, %p83
      %p85 = scmp.ne.s32.totalorder %s77, %s80
      %p86 = scmp.eq.s32.totalorder %s25, 0
      %p87 = por %p85, %p86
      %p88 = scmp.ne.s32.totalorder %s77, %s80
      %p89 = scmp.eq.s32.totalorder %s30, 1
      %p90 = por %p88, %p89
      %p91 = scmp.ne.s32.totalorder %s80, %s81
      %p92 = scmp.eq.s32.totalorder %s30, 0
      %p93 = por %p91, %p92
      %p94 = scmp.ne.s32.totalorder %s80, %s81
      %p95 = scmp.eq.s32.totalorder %s31, 1
      %p96 = por %p94, %p95
      %p98 = scmp.ne.s32.totalorder %s81, %s97
      %p99 = scmp.eq.s32.totalorder %s31, 0
      %p100 = por %p98, %p99
      %s102 = sadd.s32 %s101, 1
      %p105 = scmp.eq.s32.totalorder %s25, 1
      %p106 = scmp.ne.s32.totalorder %s101, %s103
      %p107 = scmp.eq.s32.totalorder %s25, 0
      %p108 = por %p106, %p107
      %p109 = scmp.ne.s32.totalorder %s101, %s103
      %p110 = scmp.eq.s32.totalorder %s30, 1
      %p111 = por %p109, %p110
      %p112 = scmp.ne.s32.totalorder %s103, %s104
      %p113 = scmp.eq.s32.totalorder %s30, 0
      %p114 = por %p112, %p113
      %p115 = scmp.ne.s32.totalorder %s103, %s104
      %p116 = scmp.eq.s32.totalorder %s31, 1
      %p117 = por %p115, %p116
      %p119 = scmp.ne.s32.totalorder %s104, %s118
      %p120 = scmp.eq.s32.totalorder %s31, 0
      %p121 = por %p119, %p120
      %s123 = sadd.s32 %s122, 1
      %p126 = scmp.eq.s32.totalorder %s25, 1
      %p127 = scmp.ne.s32.totalorder %s122, %s124
      %p128 = scmp.eq.s32.totalorder %s25, 0
      %p129 = por %p127, %p128
      %p130 = scmp.ne.s32.totalorder %s122, %s124
      %p131 = scmp.eq.s32.totalorder %s30, 1
      %p132 = por %p130, %p131
      %p133 = scmp.ne.s32.totalorder %s124, %s125
      %p134 = scmp.eq.s32.totalorder %s30, 0
      %p135 = por %p133, %p134
      %p136 = scmp.ne.s32.totalorder %s124, %s125
      %p137 = scmp.eq.s32.totalorder %s31, 1
      %p138 = por %p136, %p137
      %p140 = scmp.ne.s32.totalorder %s125, %s139
      %p141 = scmp.eq.s32.totalorder %s31, 0
      %p142 = por %p140, %p141
      %s144 = sadd.s32 %s143, 1
      %p147 = scmp.eq.s32.totalorder %s25, 1
      %p148 = scmp.ne.s32.totalorder %s143, %s145
      %p149 = scmp.eq.s32.totalorder %s25, 0
      %p150 = por %p148, %p149
      %p151 = scmp.ne.s32.totalorder %s143, %s145
      %p152 = scmp.eq.s32.totalorder %s30, 1
      %p153 = por %p151, %p152
      %p154 = scmp.ne.s32.totalorder %s145, %s146
      %p155 = scmp.eq.s32.totalorder %s30, 0
      %p156 = por %p154, %p155
      %p157 = scmp.ne.s32.totalorder %s145, %s146
      %p158 = scmp.eq.s32.totalorder %s31, 1
      %p159 = por %p157, %p158
      %p161 = scmp.ne.s32.totalorder %s146, %s160
      %p162 = scmp.eq.s32.totalorder %s31, 0
      %p163 = por %p161, %p162
      %s165 = sadd.s32 %s164, 1
      %p168 = scmp.eq.s32.totalorder %s25, 1
      %p169 = scmp.ne.s32.totalorder %s164, %s166
      %p170 = scmp.eq.s32.totalorder %s25, 0
      %p171 = por %p169, %p170
      %p172 = scmp.ne.s32.totalorder %s164, %s166
      %p173 = scmp.eq.s32.totalorder %s30, 1
      %p174 = por %p172, %p173
      %p175 = scmp.ne.s32.totalorder %s166, %s167
      %p176 = scmp.eq.s32.totalorder %s30, 0
      %p177 = por %p175, %p176
      %p178 = scmp.ne.s32.totalorder %s166, %s167
      %p179 = scmp.eq.s32.totalorder %s31, 1
      %p180 = por %p178, %p179
      %p182 = scmp.ne.s32.totalorder %s167, %s181
      %p183 = scmp.eq.s32.totalorder %s31, 0
      %p184 = por %p182, %p183
      %s186 = sadd.s32 %s185, 1
      %p189 = scmp.eq.s32.totalorder %s25, 1
      %p190 = scmp.ne.s32.totalorder %s185, %s187
      %p191 = scmp.eq.s32.totalorder %s25, 0
      %p192 = por %p190, %p191
      %p193 = scmp.ne.s32.totalorder %s185, %s187
      %p194 = scmp.eq.s32.totalorder %s30, 1
      %p195 = por %p193, %p194
      %p196 = scmp.ne.s32.totalorder %s187, %s188
      %p197 = scmp.eq.s32.totalorder %s30, 0
      %p198 = por %p196, %p197
      %p199 = scmp.ne.s32.totalorder %s187, %s188
      %p200 = scmp.eq.s32.totalorder %s31, 1
      %p201 = por %p199, %p200
      %p203 = scmp.ne.s32.totalorder %s188, %s202
      %p204 = scmp.eq.s32.totalorder %s31, 0
      %p205 = por %p203, %p204
      %s207 = sadd.s32 %s206, 1
      %p210 = scmp.eq.s32.totalorder %s25, 1
      %p211 = scmp.ne.s32.totalorder %s206, %s208
      %p212 = scmp.eq.s32.totalorder %s25, 0
      %p213 = por %p211, %p212
      %p214 = scmp.ne.s32.totalorder %s206, %s208
      %p215 = scmp.eq.s32.totalorder %s30, 1
      %p216 = por %p214, %p215
      %p217 = scmp.ne.s32.totalorder %s208, %s209
      %p218 = scmp.eq.s32.totalorder %s30, 0
      %p219 = por %p217, %p218
      %p220 = scmp.ne.s32.totalorder %s208, %s209
      %p221 = scmp.eq.s32.totalorder %s31, 1
      %p222 = por %p220, %p221
      %p224 = scmp.ne.s32.totalorder %s209, %s223
      %p225 = scmp.eq.s32.totalorder %s31, 0
      %p226 = por %p224, %p225
      %s227 = ssub.s32 %s32, %s44
      %s228 = ssub.s32 %s33, %s40
      %s229 = sor.u32 %s227, %s228
      %p230 = scmp.eq.s32.totalorder %s229, 0
      %s232 = sadd.s32 %s231, 1
      %s233 = scalar_select %p230, %s231, %s232
      %p236 = pneg %p230
      %p237 = scmp.eq.s32.totalorder %s25, 1
      %p238 = por %p236, %p237
      %p239 = scmp.ne.s32.totalorder %s231, %s234
      %p240 = scmp.eq.s32.totalorder %s25, 0
      %p241 = por %p239, %p240
      %p242 = scmp.ne.s32.totalorder %s231, %s234
      %p243 = scmp.eq.s32.totalorder %s30, 1
      %p244 = por %p242, %p243
      %p245 = scmp.ne.s32.totalorder %s234, %s235
      %p246 = scmp.eq.s32.totalorder %s30, 0
      %p247 = por %p245, %p246
      %p248 = scmp.ne.s32.totalorder %s234, %s235
      %p249 = scmp.eq.s32.totalorder %s31, 1
      %p250 = por %p248, %p249
      %p252 = scmp.ne.s32.totalorder %s235, %s251
      %p253 = scmp.eq.s32.totalorder %s31, 0
      %p254 = por %p252, %p253
      %p255 = scmp.le.s32.totalorder 1, %s25
      %p256 = scmp.lt.s32.totalorder %s25, 3
      %p257 = pnand %p255, %p256
      %p258 = pneg %p257
      // Predicated region
      $region9: #{_attention_gate_pallas.1} parent=5 // pred_check
        _
      $region10: #{_attention_gate_pallas.1} parent=5 // pred_check_branch
        %260 = sbr.rel (%p257) target = $region12
      $region11: #{_attention_gate_pallas.1} parent=5 // pred_region
        %s261 = ssub.s32 %s25, 1
        // Predicated region
        $region13: #{_attention_gate_pallas.1} parent=11 // pred_check
          %p262 = pneg %p114
        $region14: #{_attention_gate_pallas.1} parent=11 // pred_check_branch
          %264 = sbr.rel (%p262) target = $region16
        $region15: #{_attention_gate_pallas.1} parent=11 // pred_region
          _
        $region16: #{_attention_gate_pallas.1} parent=11 // pred_fallthru
          _
        // Predicated region
        $region17: #{_attention_gate_pallas.1} parent=11 // pred_check
          %p265 = pneg %p135
        $region18: #{_attention_gate_pallas.1} parent=11 // pred_check_branch
          %267 = sbr.rel (%p265) target = $region20
        $region19: #{_attention_gate_pallas.1} parent=11 // pred_region
          _
        $region20: #{_attention_gate_pallas.1} parent=11 // pred_fallthru
          _
        // Predicated region
        $region21: #{_attention_gate_pallas.1} parent=11 // pred_check
          %p268 = pneg %p156
        $region22: #{_attention_gate_pallas.1} parent=11 // pred_check_branch
          %270 = sbr.rel (%p268) target = $region24
        $region23: #{_attention_gate_pallas.1} parent=11 // pred_region
          _
        $region24: #{_attention_gate_pallas.1} parent=11 // pred_fallthru
          _
        // Predicated region
        $region25: #{_attention_gate_pallas.1} parent=11 // pred_check
          %p271 = pneg %p177
        $region26: #{_attention_gate_pallas.1} parent=11 // pred_check_branch
          %273 = sbr.rel (%p271) target = $region28
        $region27: #{_attention_gate_pallas.1} parent=11 // pred_region
          _
        $region28: #{_attention_gate_pallas.1} parent=11 // pred_fallthru
          _
        // Predicated region
        $region29: #{_attention_gate_pallas.1} parent=11 // pred_check
          %p274 = pneg %p198
        $region30: #{_attention_gate_pallas.1} parent=11 // pred_check_branch
          %276 = sbr.rel (%p274) target = $region32
        $region31: #{_attention_gate_pallas.1} parent=11 // pred_region
          _
        $region32: #{_attention_gate_pallas.1} parent=11 // pred_fallthru
          _
        // Predicated region
        $region33: #{_attention_gate_pallas.1} parent=11 // pred_check
          %p277 = pneg %p219
        $region34: #{_attention_gate_pallas.1} parent=11 // pred_check_branch
          %279 = sbr.rel (%p277) target = $region36
        $region35: #{_attention_gate_pallas.1} parent=11 // pred_region
          _
        $region36: #{_attention_gate_pallas.1} parent=11 // pred_fallthru
          _
      $region12: #{_attention_gate_pallas.1} parent=5 // pred_fallthru
        _
      %p280 = scmp.lt.s32.totalorder %s25, 2
      // Predicated region
      $region37: #{_attention_gate_pallas.1} parent=5 // pred_check
        %p281 = pneg %p280
      $region38: #{_attention_gate_pallas.1} parent=5 // pred_check_branch
        %283 = sbr.rel (%p281) target = $region40
      $region39: #{_attention_gate_pallas.1} parent=5 // pred_region
        // Predicated region
        $region41: #{_attention_gate_pallas.1} parent=39 // pred_check
          %p284 = pneg %p59
        $region42: #{_attention_gate_pallas.1} parent=39 // pred_check_branch
          %286 = sbr.rel (%p284) target = $region44
        $region43: #{_attention_gate_pallas.1} parent=39 // pred_region
          %s287 = sand.u32 %s49, 1
          %s288 = scalar_lea.sflag [#allocation4], %s287
          %s289 = sand.u32 %s49, 1
          %s290 = smul.addr %s289, 16
          %s291 = scalar_lea.vmem [#allocation3], %s290
          %s292 = smul.u32 4, %s33
          %294 = vsyncadd %s288, 0
          %s295 = smul.addr %s32, 4
          %s296 = sadd.s32 %s292, %s295
          %s297 = smul.addr %s296, 4
          %s298 = scalar_lea.hbm %s0, %s297
          %s300 = sshll.u32 %s298, 4
          %s301 = int_to_ptr.hbm [resolvable:$true] %s300
          %s302 = sshll.u32 %s291, 4
          %s303 = int_to_ptr.vmem [resolvable:$true] %s302
          %305 = dma.hbm_to_vmem [thread:$0]  %s301, 256, %s303, %s288
        $region44: #{_attention_gate_pallas.1} parent=39 // pred_fallthru
          _
        // Predicated region
        $region45: #{_attention_gate_pallas.1} parent=39 // pred_check
          %p306 = pneg %p87
        $region46: #{_attention_gate_pallas.1} parent=39 // pred_check_branch
          %308 = sbr.rel (%p306) target = $region48
        $region47: #{_attention_gate_pallas.1} parent=39 // pred_region
          %s309 = sand.u32 %s77, 1
          %s310 = scalar_lea.sflag [#allocation7], %s309
          %s311 = sand.u32 %s77, 1
          %s312 = smul.addr %s311, 16
          %s313 = scalar_lea.vmem [#allocation6], %s312
          %s314 = smul.u32 4, %s33
          %316 = vsyncadd %s310, 0
          %s317 = smul.addr %s32, 4
          %s318 = sadd.s32 %s314, %s317
          %s319 = smul.addr %s318, 4
          %s320 = scalar_lea.hbm %s1, %s319
          %s322 = sshll.u32 %s320, 4
          %s323 = int_to_ptr.hbm [resolvable:$true] %s322
          %s324 = sshll.u32 %s313, 4
          %s325 = int_to_ptr.vmem [resolvable:$true] %s324
          %327 = dma.hbm_to_vmem [thread:$0]  %s323, 256, %s325, %s310
        $region48: #{_attention_gate_pallas.1} parent=39 // pred_fallthru
          _
      $region40: #{_attention_gate_pallas.1} parent=5 // pred_fallthru
        _
      %p328 = scmp.le.s32.totalorder 1, %s25
      %p329 = scmp.lt.s32.totalorder %s25, 3
      %p330 = pnand %p328, %p329
      %p331 = pneg %p330
      // Predicated region
      $region49: #{_attention_gate_pallas.1} parent=5 // pred_check
        _
      $region50: #{_attention_gate_pallas.1} parent=5 // pred_check_branch
        %333 = sbr.rel (%p330) target = $region52
      $region51: #{_attention_gate_pallas.1} parent=5 // pred_region
        %s334 = ssub.s32 %s25, 1
        %s335 = sand.u32 %s52, 1
        %s336 = scalar_lea.sflag [#allocation4], %s335
        %s337 = sand.u32 %s52, 1
        %s338 = smul.addr %s337, 16
        %s339 = scalar_lea.vmem [#allocation3], %s338
        // Predicated region
        $region53: #{_attention_gate_pallas.1} parent=51 // pred_check
          %p340 = pneg %p65
        $region54: #{_attention_gate_pallas.1} parent=51 // pred_check_branch
          %342 = sbr.rel (%p340) target = $region56
        $region55: #{_attention_gate_pallas.1} parent=51 // pred_region
          %344 = dma.done %s336, 256
        $region56: #{_attention_gate_pallas.1} parent=51 // pred_fallthru
          _
        %s345 = sand.u32 %s80, 1
        %s346 = scalar_lea.sflag [#allocation7], %s345
        %s347 = sand.u32 %s80, 1
        %s348 = smul.addr %s347, 16
        %s349 = scalar_lea.vmem [#allocation6], %s348
        // Predicated region
        $region57: #{_attention_gate_pallas.1} parent=51 // pred_check
          %p350 = pneg %p93
        $region58: #{_attention_gate_pallas.1} parent=51 // pred_check_branch
          %352 = sbr.rel (%p350) target = $region60
        $region59: #{_attention_gate_pallas.1} parent=51 // pred_region
          %354 = dma.done %s346, 256
        $region60: #{_attention_gate_pallas.1} parent=51 // pred_fallthru
          _
        %s355 = sand.u32 %s52, 1
        %s356 = scalar_lea.sflag [#allocation4], %s355
        %s357 = sand.u32 %s52, 1
        %s358 = smul.addr %s357, 16
        %s359 = scalar_lea.vmem [#allocation3], %s358
        %p360 = pneg %p65
        %p361 = pneg %p62
        %s362 = sand.u32 %s80, 1
        %s363 = scalar_lea.sflag [#allocation7], %s362
        %s364 = sand.u32 %s80, 1
        %s365 = smul.addr %s364, 16
        %s366 = scalar_lea.vmem [#allocation6], %s365
        %p367 = pneg %p93
        %p368 = pneg %p90
        %p369 = pneg %p114
        %p370 = pneg %p111
        %p371 = pneg %p135
        %p372 = pneg %p132
        %p373 = pneg %p156
        %p374 = pneg %p153
        %p375 = pneg %p177
        %p376 = pneg %p174
        %p377 = pneg %p198
        %p378 = pneg %p195
        %p379 = pneg %p219
        %p380 = pneg %p216
        %p381 = pneg %p247
        %p382 = pneg %p244
        %s383 = sand.u32 %s234, 1
        %s384 = scalar_lea.sflag [#allocation5], %s383
        %s385 = sand.u32 %s234, 1
        %s386 = smul.addr %s385, 32
        %s387 = scalar_lea.vmem [#allocation8], %s386
        %s388 = smul.u32 4, %s35
        %s389 = smul.u32 4, %s35
        %s390 = smul.u32 4, %s35
        %v391 = vld [vmem:[%s339] sm:$0xff]
        %v392 = vld [vmem:[%s339 + $0x8] sm:$0xff]
        %v393 = vld [vmem:[%s349] sm:$0xff]
        %v394 = vld [vmem:[%s349 + $0x8] sm:$0xff]
        %v395 = vld [vmem:[%s2] sm:$0xff]
        %v396 = vld [vmem:[%s3] sm:$0xff]
        %398 = vset.pattern.permute.xlu0 0
        %399 = vperm.xlu0 %398, %v396
        %v400 = vpop.permute.xlu0 %399
        %404 = vst [vmem:[#allocation1] ss:$2 sm:$0xff] %v391
        %s405 = scalar_lea.vmem [#allocation1], 16
        %406 = vst [vmem:[%s405] ss:$2 sm:$0xff] %v392
        %v407 = vld.sshfl [vmem:[#allocation1] sm:$0xff pattern:$0x75316420]
        %v408 = vld.sshfl [vmem:[#allocation1 + $0x8] sm:$0xff pattern:$0x75316420]
        %v409 = vld.sshfl [vmem:[#allocation1 + $0x10] sm:$0xff pattern:$0x75316420]
        %v410 = vld.sshfl [vmem:[#allocation1 + $0x18] sm:$0xff pattern:$0x75316420]
        %vm411 = vcmask 31744
        %v413 = vsel %vm411, %v395, 0
        %vm415 = vcmask 1043456
        %v416 = vsel %vm415, %v407, 0
        %v418 = vsel %vm415, %v408, 0
        %v420 = vsel %vm415, %v409, 0
        %v422 = vsel %vm415, %v410, 0
        %424 = vmatpush.msra.mxu0 0.0
        %425 = vmatpush.msra.mxu0 0.0
        %426 = vmatpush.msra.mxu0 0.0
        %427 = vmatpush.msra.mxu0 0.0
        %428 = vmatpush.msra.mxu0 0.0
        %429 = vmatpush.msra.mxu0 0.0
        %430 = vmatpush.msra.mxu0 0.0
        %431 = vmatpush.msra.mxu0 0.0
        %432 = vmatpush.msra.mxu0 0.0
        %433 = vmatpush.msra.mxu0 0.0
        %434 = vmatpush.msra.mxu0 0.0
        %435 = vmatpush.msra.mxu0 0.0
        %436 = vmatpush.msra.mxu0 0.0
        %437 = vmatpush.msra.mxu0 0.0
        %438 = vmatpush.msra.mxu0 0.0
        %439 = vmatpush.msra.mxu0 %v416
        %440 = vmatmul.f32.gmra.mxu0 %v413
        %v441 = vpop.f32.mrf.mxu0
        %v442 = vadd.f32 %v400, %v441
        %443 = vdwg.mxu0
        %444 = vmatpush.msra.mxu0 0.0
        %445 = vmatpush.msra.mxu0 0.0
        %446 = vmatpush.msra.mxu0 0.0
        %447 = vmatpush.msra.mxu0 0.0
        %448 = vmatpush.msra.mxu0 0.0
        %449 = vmatpush.msra.mxu0 0.0
        %450 = vmatpush.msra.mxu0 0.0
        %451 = vmatpush.msra.mxu0 0.0
        %452 = vmatpush.msra.mxu0 0.0
        %453 = vmatpush.msra.mxu0 0.0
        %454 = vmatpush.msra.mxu0 0.0
        %455 = vmatpush.msra.mxu0 0.0
        %456 = vmatpush.msra.mxu0 0.0
        %457 = vmatpush.msra.mxu0 0.0
        %458 = vmatpush.msra.mxu0 0.0
        %459 = vmatpush.msra.mxu0 %v418
        %460 = vmatmul.f32.gmra.mxu0 %v413
        %v461 = vpop.f32.mrf.mxu0
        %v462 = vadd.f32 %v400, %v461
        %463 = vdwg.mxu0
        %464 = vmatpush.msra.mxu0 0.0
        %465 = vmatpush.msra.mxu0 0.0
        %466 = vmatpush.msra.mxu0 0.0
        %467 = vmatpush.msra.mxu0 0.0
        %468 = vmatpush.msra.mxu0 0.0
        %469 = vmatpush.msra.mxu0 0.0
        %470 = vmatpush.msra.mxu0 0.0
        %471 = vmatpush.msra.mxu0 0.0
        %472 = vmatpush.msra.mxu0 0.0
        %473 = vmatpush.msra.mxu0 0.0
        %474 = vmatpush.msra.mxu0 0.0
        %475 = vmatpush.msra.mxu0 0.0
        %476 = vmatpush.msra.mxu0 0.0
        %477 = vmatpush.msra.mxu0 0.0
        %478 = vmatpush.msra.mxu0 0.0
        %479 = vmatpush.msra.mxu0 %v420
        %480 = vmatmul.f32.gmra.mxu0 %v413
        %v481 = vpop.f32.mrf.mxu0
        %v482 = vadd.f32 %v400, %v481
        %483 = vdwg.mxu0
        %484 = vmatpush.msra.mxu0 0.0
        %485 = vmatpush.msra.mxu0 0.0
        %486 = vmatpush.msra.mxu0 0.0
        %487 = vmatpush.msra.mxu0 0.0
        %488 = vmatpush.msra.mxu0 0.0
        %489 = vmatpush.msra.mxu0 0.0
        %490 = vmatpush.msra.mxu0 0.0
        %491 = vmatpush.msra.mxu0 0.0
        %492 = vmatpush.msra.mxu0 0.0
        %493 = vmatpush.msra.mxu0 0.0
        %494 = vmatpush.msra.mxu0 0.0
        %495 = vmatpush.msra.mxu0 0.0
        %496 = vmatpush.msra.mxu0 0.0
        %497 = vmatpush.msra.mxu0 0.0
        %498 = vmatpush.msra.mxu0 0.0
        %499 = vmatpush.msra.mxu0 %v422
        %500 = vmatmul.f32.gmra.mxu0 %v413
        %v501 = vpop.f32.mrf.mxu0
        %v502 = vadd.f32 %v400, %v501
        %503 = vdwg.mxu0
        %v504 = vld [vmem:[%s4] sm:$0xff]
        %v505 = vld [vmem:[%s5] sm:$0xff]
        %507 = vset.pattern.permute.xlu0 0
        %508 = vperm.xlu0 %507, %v505
        %v509 = vpop.permute.xlu0 %508
        %513 = vst [vmem:[#allocation1] ss:$2 sm:$0xff] %v393
        %s514 = scalar_lea.vmem [#allocation1], 16
        %515 = vst [vmem:[%s514] ss:$2 sm:$0xff] %v394
        %v516 = vld.sshfl [vmem:[#allocation1] sm:$0xff pattern:$0x75316420]
        %v517 = vld.sshfl [vmem:[#allocation1 + $0x8] sm:$0xff pattern:$0x75316420]
        %v518 = vld.sshfl [vmem:[#allocation1 + $0x10] sm:$0xff pattern:$0x75316420]
        %v519 = vld.sshfl [vmem:[#allocation1 + $0x18] sm:$0xff pattern:$0x75316420]
        %v521 = vsel %vm411, %v504, 0
        %v523 = vsel %vm415, %v516, 0
        %v525 = vsel %vm415, %v517, 0
        %v527 = vsel %vm415, %v518, 0
        %v529 = vsel %vm415, %v519, 0
        %531 = vmatpush.msra.mxu0 0.0
        %532 = vmatpush.msra.mxu0 0.0
        %533 = vmatpush.msra.mxu0 0.0
        %534 = vmatpush.msra.mxu0 0.0
        %535 = vmatpush.msra.mxu0 0.0
        %536 = vmatpush.msra.mxu0 0.0
        %537 = vmatpush.msra.mxu0 0.0
        %538 = vmatpush.msra.mxu0 0.0
        %539 = vmatpush.msra.mxu0 0.0
        %540 = vmatpush.msra.mxu0 0.0
        %541 = vmatpush.msra.mxu0 0.0
        %542 = vmatpush.msra.mxu0 0.0
        %543 = vmatpush.msra.mxu0 0.0
        %544 = vmatpush.msra.mxu0 0.0
        %545 = vmatpush.msra.mxu0 0.0
        %546 = vmatpush.msra.mxu0 %v523
        %547 = vmatmul.f32.gmra.mxu0 %v521
        %v548 = vpop.f32.mrf.mxu0
        %v549 = vadd.f32 %v509, %v548
        %550 = vdwg.mxu0
        %551 = vmatpush.msra.mxu0 0.0
        %552 = vmatpush.msra.mxu0 0.0
        %553 = vmatpush.msra.mxu0 0.0
        %554 = vmatpush.msra.mxu0 0.0
        %555 = vmatpush.msra.mxu0 0.0
        %556 = vmatpush.msra.mxu0 0.0
        %557 = vmatpush.msra.mxu0 0.0
        %558 = vmatpush.msra.mxu0 0.0
        %559 = vmatpush.msra.mxu0 0.0
        %560 = vmatpush.msra.mxu0 0.0
        %561 = vmatpush.msra.mxu0 0.0
        %562 = vmatpush.msra.mxu0 0.0
        %563 = vmatpush.msra.mxu0 0.0
        %564 = vmatpush.msra.mxu0 0.0
        %565 = vmatpush.msra.mxu0 0.0
        %566 = vmatpush.msra.mxu0 %v525
        %567 = vmatmul.f32.gmra.mxu0 %v521
        %v568 = vpop.f32.mrf.mxu0
        %v569 = vadd.f32 %v509, %v568
        %570 = vdwg.mxu0
        %571 = vmatpush.msra.mxu0 0.0
        %572 = vmatpush.msra.mxu0 0.0
        %573 = vmatpush.msra.mxu0 0.0
        %574 = vmatpush.msra.mxu0 0.0
        %575 = vmatpush.msra.mxu0 0.0
        %576 = vmatpush.msra.mxu0 0.0
        %577 = vmatpush.msra.mxu0 0.0
        %578 = vmatpush.msra.mxu0 0.0
        %579 = vmatpush.msra.mxu0 0.0
        %580 = vmatpush.msra.mxu0 0.0
        %581 = vmatpush.msra.mxu0 0.0
        %582 = vmatpush.msra.mxu0 0.0
        %583 = vmatpush.msra.mxu0 0.0
        %584 = vmatpush.msra.mxu0 0.0
        %585 = vmatpush.msra.mxu0 0.0
        %586 = vmatpush.msra.mxu0 %v527
        %587 = vmatmul.f32.gmra.mxu0 %v521
        %v588 = vpop.f32.mrf.mxu0
        %v589 = vadd.f32 %v509, %v588
        %590 = vdwg.mxu0
        %591 = vmatpush.msra.mxu0 0.0
        %592 = vmatpush.msra.mxu0 0.0
        %593 = vmatpush.msra.mxu0 0.0
        %594 = vmatpush.msra.mxu0 0.0
        %595 = vmatpush.msra.mxu0 0.0
        %596 = vmatpush.msra.mxu0 0.0
        %597 = vmatpush.msra.mxu0 0.0
        %598 = vmatpush.msra.mxu0 0.0
        %599 = vmatpush.msra.mxu0 0.0
        %600 = vmatpush.msra.mxu0 0.0
        %601 = vmatpush.msra.mxu0 0.0
        %602 = vmatpush.msra.mxu0 0.0
        %603 = vmatpush.msra.mxu0 0.0
        %604 = vmatpush.msra.mxu0 0.0
        %605 = vmatpush.msra.mxu0 0.0
        %606 = vmatpush.msra.mxu0 %v529
        %607 = vmatmul.f32.gmra.mxu0 %v521
        %v608 = vpop.f32.mrf.mxu0
        %v609 = vadd.f32 %v509, %v608
        %610 = vdwg.mxu0
        %v611 = vadd.f32 %v442, %v549
        %v612 = vadd.f32 %v462, %v569
        %v613 = vadd.f32 %v482, %v589
        %v614 = vadd.f32 %v502, %v609
        %v615 = vmax.f32 %v611, 0.0
        %v616 = vmax.f32 %v612, 0.0
        %v617 = vmax.f32 %v613, 0.0
        %v618 = vmax.f32 %v614, 0.0
        %v619 = vld [vmem:[%s6] sm:$0xff]
        %621 = vset.pattern.permute.xlu0 0
        %622 = vperm.xlu0 %621, %v619
        %v623 = vpop.permute.xlu0 %622
        %v625 = vmul.f32 %v615, %v623
        %v626 = vmul.f32 %v616, %v623
        %v627 = vmul.f32 %v617, %v623
        %v628 = vmul.f32 %v618, %v623
        %v629 = vrot.slane %v625, 4
        %v630 = vadd.f32 %v625, %v629
        %v631 = vrot.slane %v630, 2
        %v632 = vadd.f32 %v630, %v631
        %v633 = vrot.slane %v632, 1
        %v634 = vadd.f32 %v632, %v633
        %v635 = vrot.slane %v626, 4
        %v636 = vadd.f32 %v626, %v635
        %v637 = vrot.slane %v636, 2
        %v638 = vadd.f32 %v636, %v637
        %v639 = vrot.slane %v638, 1
        %v640 = vadd.f32 %v638, %v639
        %v641 = vrot.slane %v627, 4
        %v642 = vadd.f32 %v627, %v641
        %v643 = vrot.slane %v642, 2
        %v644 = vadd.f32 %v642, %v643
        %v645 = vrot.slane %v644, 1
        %v646 = vadd.f32 %v644, %v645
        %v647 = vrot.slane %v628, 4
        %v648 = vadd.f32 %v628, %v647
        %v649 = vrot.slane %v648, 2
        %v650 = vadd.f32 %v648, %v649
        %v651 = vrot.slane %v650, 1
        %v652 = vadd.f32 %v650, %v651
        %v653 = vld [vmem:[#allocation2] sm:$0x1]
        %655 = vset.pattern.permute.xlu0 0
        %656 = vperm.xlu0 %655, %v653
        %v657 = vpop.permute.xlu0 %656
        %v659 = vperm.slane %v657, 0
        %v660 = vadd.f32 %v634, %v659
        %v661 = vadd.f32 %v640, %v659
        %v662 = vadd.f32 %v646, %v659
        %v663 = vadd.f32 %v652, %v659
        %v664 = vxor.u32 %v660, 2147483648
        %v665 = vxor.u32 %v661, 2147483648
        %v666 = vxor.u32 %v662, 2147483648
        %v667 = vxor.u32 %v663, 2147483648
        %v668 = vmul.f32 %v664, 1.442695
        %v669 = vpow.pop %v668
        %v670 = vmul.f32 %v665, 1.442695
        %v671 = vpow.pop %v670
        %v672 = vmul.f32 %v666, 1.442695
        %v673 = vpow.pop %v672
        %v674 = vmul.f32 %v667, 1.442695
        %v675 = vpow.pop %v674
        %v676 = vadd.f32 %v669, 1.0
        %v677 = vadd.f32 %v671, 1.0
        %v678 = vadd.f32 %v673, 1.0
        %v679 = vadd.f32 %v675, 1.0
        %v680 = vrcp.pop %v676
        %v681 = vmul.f32 %v676, %v680
        %v682 = vsub.f32 1.0, %v681
        %v683 = vmul.f32 %v680, %v682
        %v684 = vadd.f32 %v680, %v683
        %vm685 = vweird.f32 %v676
        %vm686 = vweird.f32 %v680
        %vm687 = vmor %vm685, %vm686
        %v688 = vsel %vm687, %v680, %v684
        %v689 = vand.u32 2147483647, %v676
        %vm690 = vcmp.eq.f32.partialorder %v689, 8.507059e+37
        %v691 = vand.u32 %v676, 2147483648
        %v692 = vor.u32 1.1754944e-38, %v691
        %v693 = vsel %vm690, %v692, %v688
        %v694 = vmul.f32 1.0, %v693
        %v695 = vrcp.pop %v677
        %v696 = vmul.f32 %v677, %v695
        %v697 = vsub.f32 1.0, %v696
        %v698 = vmul.f32 %v695, %v697
        %v699 = vadd.f32 %v695, %v698
        %vm700 = vweird.f32 %v677
        %vm701 = vweird.f32 %v695
        %vm702 = vmor %vm700, %vm701
        %v703 = vsel %vm702, %v695, %v699
        %v704 = vand.u32 2147483647, %v677
        %vm705 = vcmp.eq.f32.partialorder %v704, 8.507059e+37
        %v706 = vand.u32 %v677, 2147483648
        %v707 = vor.u32 1.1754944e-38, %v706
        %v708 = vsel %vm705, %v707, %v703
        %v709 = vmul.f32 1.0, %v708
        %v710 = vrcp.pop %v678
        %v711 = vmul.f32 %v678, %v710
        %v712 = vsub.f32 1.0, %v711
        %v713 = vmul.f32 %v710, %v712
        %v714 = vadd.f32 %v710, %v713
        %vm715 = vweird.f32 %v678
        %vm716 = vweird.f32 %v710
        %vm717 = vmor %vm715, %vm716
        %v718 = vsel %vm717, %v710, %v714
        %v719 = vand.u32 2147483647, %v678
        %vm720 = vcmp.eq.f32.partialorder %v719, 8.507059e+37
        %v721 = vand.u32 %v678, 2147483648
        %v722 = vor.u32 1.1754944e-38, %v721
        %v723 = vsel %vm720, %v722, %v718
        %v724 = vmul.f32 1.0, %v723
        %v725 = vrcp.pop %v679
        %v726 = vmul.f32 %v679, %v725
        %v727 = vsub.f32 1.0, %v726
        %v728 = vmul.f32 %v725, %v727
        %v729 = vadd.f32 %v725, %v728
        %vm730 = vweird.f32 %v679
        %vm731 = vweird.f32 %v725
        %vm732 = vmor %vm730, %vm731
        %v733 = vsel %vm732, %v725, %v729
        %v734 = vand.u32 2147483647, %v679
        %vm735 = vcmp.eq.f32.partialorder %v734, 8.507059e+37
        %v736 = vand.u32 %v679, 2147483648
        %v737 = vor.u32 1.1754944e-38, %v736
        %v738 = vsel %vm735, %v737, %v733
        %v739 = vmul.f32 1.0, %v738
        %v740 = vmul.f32 %v549, %v694
        %v741 = vmul.f32 %v569, %v709
        %v742 = vmul.f32 %v589, %v724
        %v743 = vmul.f32 %v609, %v739
        %744 = vst [vmem:[%s387] sm:$0xff] %v740
        %745 = vst [vmem:[%s387 + $0x8] sm:$0xff] %v741
        %746 = vst [vmem:[%s387 + $0x10] sm:$0xff] %v742
        %747 = vst [vmem:[%s387 + $0x18] sm:$0xff] %v743
        %s748 = sand.u32 %s234, 1
        %s749 = scalar_lea.sflag [#allocation5], %s748
        %s750 = sand.u32 %s234, 1
        %s751 = smul.addr %s750, 32
        %s752 = scalar_lea.vmem [#allocation8], %s751
        // Predicated region
        $region61: #{_attention_gate_pallas.1} parent=51 // pred_check
          %p753 = pneg %p244
        $region62: #{_attention_gate_pallas.1} parent=51 // pred_check_branch
          %755 = sbr.rel (%p753) target = $region64
        $region63: #{_attention_gate_pallas.1} parent=51 // pred_region
          %s756 = smul.u32 4, %s35
          %758 = vsyncadd %s749, 0
          %s759 = smul.addr %s34, 4
          %s760 = sadd.s32 %s756, %s759
          %s761 = smul.addr %s760, 8
          %s762 = scalar_lea.hbm %s8, %s761
          %s764 = sshll.u32 %s752, 4
          %s765 = int_to_ptr.vmem [resolvable:$true] %s764
          %s766 = sshll.u32 %s762, 4
          %s767 = int_to_ptr.hbm [resolvable:$true] %s766
          %769 = dma.vmem_to_hbm [thread:$0]  %s765, 512, %s767, %s749
        $region64: #{_attention_gate_pallas.1} parent=51 // pred_fallthru
          _
      $region52: #{_attention_gate_pallas.1} parent=5 // pred_fallthru
        _
      %p770 = scmp.le.s32.totalorder 2, %s25
      // Predicated region
      $region65: #{_attention_gate_pallas.1} parent=5 // pred_check
        %p771 = pneg %p770
      $region66: #{_attention_gate_pallas.1} parent=5 // pred_check_branch
        %773 = sbr.rel (%p771) target = $region68
      $region67: #{_attention_gate_pallas.1} parent=5 // pred_region
        %s774 = ssub.s32 %s25, 2
        // Predicated region
        $region69: #{_attention_gate_pallas.1} parent=67 // pred_check
          %p775 = pneg %p250
        $region70: #{_attention_gate_pallas.1} parent=67 // pred_check_branch
          %777 = sbr.rel (%p775) target = $region72
        $region71: #{_attention_gate_pallas.1} parent=67 // pred_region
          %s778 = sand.u32 %s235, 1
          %s779 = scalar_lea.sflag [#allocation5], %s778
          %s780 = sand.u32 %s235, 1
          %s781 = smul.addr %s780, 32
          %s782 = scalar_lea.vmem [#allocation8], %s781
          %784 = dma.done %s779, 512
        $region72: #{_attention_gate_pallas.1} parent=67 // pred_fallthru
          _
      $region68: #{_attention_gate_pallas.1} parent=5 // pred_fallthru
        _
    $region6: #{_attention_gate_pallas.1} parent=1 // loop_footer
      %s29 = sadd.s32 1, %s25
    $region7: #{_attention_gate_pallas.1} parent=1 // loop_footer_branch
      %24 = sbr.rel target = $region3
    $region8: #{_attention_gate_pallas.1} parent=1 // loop_exit
      _
    %785 = vsyncpa [#allocation4], 1
    %s786 = scalar_lea.sflag [#allocation4], 1
    %787 = vsyncpa %s786, 1
    %788 = vsyncpa [#allocation7], 1
    %s789 = scalar_lea.sflag [#allocation7], 1
    %790 = vsyncpa %s789, 1
    %791 = vsyncpa [#allocation5], 1
    %s792 = scalar_lea.sflag [#allocation5], 1
    %793 = vsyncpa %s792, 1

</llo_original>
